<compile_context>
chip_gen: v7x
topology: tpu7x:2x2x1
jax: 0.10.0
libtpu: 0.0.40
codegen_flags: <defaults>
</compile_context>

<pallas_src>
import functools

import jax
import jax.numpy as jnp
from jax.experimental import pallas as pl
from jax.experimental.pallas import tpu as pltpu


# ----------------------------------------------------------------------------
# Shared in-kernel math (f32 compute, bf16 MXU operands)
# ----------------------------------------------------------------------------
def _attention_aggregate(user, self_v, nbr, rel, w_ref, b_ref, act):
    """KGCN 'sum' aggregation for a block of entity rows.

    user   : [1 or R, D] f32   (broadcast over rows if leading dim is 1)
    self_v : [R, D]      f32
    nbr    : [R, N, D]   f32
    rel    : [R, N, D]   f32
    returns activated [R, D] f32.
    """
    # user-relation attention scores, softmax over the neighbor axis
    scores = jnp.sum(user[:, None, :] * rel, axis=-1)                 # [R, N]
    scores = scores - jnp.max(scores, axis=-1, keepdims=True)
    p = jnp.exp(scores)
    p = p * pl.reciprocal(jnp.sum(p, axis=-1, keepdims=True), approx=True)

    # weighted neighbor aggregation
    agg = jnp.sum(p[:, :, None] * nbr, axis=1)                        # [R, D]

    # sum aggregator: (self + agg) @ W + b, then activation
    x = self_v + agg
    y = jnp.dot(x.astype(w_ref.dtype), w_ref[...],
                preferred_element_type=jnp.float32)
    y = y + b_ref[...].astype(jnp.float32)
    return jnp.tanh(y) if act == "tanh" else jax.nn.sigmoid(y)


def _agg_kernel(user_ref, self_ref, nbr_ref, rel_ref, w_ref, b_ref, out_ref,
                *, act):
    """One (batch, row-tile) block of a KGCN aggregation iteration."""
    user = user_ref[...].astype(jnp.float32)       # [1, D]
    self_v = self_ref[...].astype(jnp.float32)     # [TM, D]
    nbr = nbr_ref[...].astype(jnp.float32)         # [TM, N, D]
    rel = rel_ref[...].astype(jnp.float32)         # [TM, N, D]
    y = _attention_aggregate(user, self_v, nbr, rel, w_ref, b_ref, act)
    out_ref[...] = y.astype(out_ref.dtype)


def _final_kernel(user_ref, self_ref, nbr_ref, rel_ref, w_ref, b_ref,
                  score_ref):
    """Last iteration (hop 0, act=tanh) fused with sigmoid(user . item)."""
    user = user_ref[...].astype(jnp.float32)       # [TB, D]
    self_v = self_ref[...].astype(jnp.float32)     # [TB, D]
    nbr = nbr_ref[...].astype(jnp.float32)         # [TB, N, D]
    rel = rel_ref[...].astype(jnp.float32)         # [TB, N, D]
    item = _attention_aggregate(user, self_v, nbr, rel, w_ref, b_ref, "tanh")
    s = jnp.sum(user * item, axis=-1, keepdims=True)                  # [TB, 1]
    score_ref[...] = jax.nn.sigmoid(s).astype(score_ref.dtype)


# ----------------------------------------------------------------------------
# Wrappers around pallas_call
# ----------------------------------------------------------------------------
def _pick_row_tile(n_rows, row_bytes, budget_bytes=4 << 20):
    """Largest tile that divides n_rows, is a multiple of 8 (or the full
    axis), and keeps one buffer set within the VMEM byte budget."""
    max_rows = max(8, budget_bytes // max(row_bytes, 1))
    if n_rows <= max_rows:
        return n_rows
    t = (max_rows // 8) * 8
    while t >= 8:
        if n_rows % t == 0:
            return t
        t -= 8
    return n_rows  # no aligned divisor: fall back to one block


def aggregator_call(self_vecs, nbr_vecs, rel_vecs, user_emb, W, b, act):
    """self_vecs [B,M,D]; nbr/rel [B,M,N,D]; user [B,D] -> [B,M,D]."""
    B, M, D = self_vecs.shape
    N = nbr_vecs.shape[2]
    in_bytes = self_vecs.dtype.itemsize
    row_bytes = (2 * D + 2 * N * D) * in_bytes          # self + out + nbr + rel
    TM = _pick_row_tile(M, row_bytes)
    vmem_limit = int(min(max(4 * TM * row_bytes + (2 << 20), 8 << 20), 32 << 20))

    user3 = user_emb.reshape(B, 1, D)
    b2 = b.reshape(1, D)

    return pl.pallas_call(
        functools.partial(_agg_kernel, act=act),
        out_shape=jax.ShapeDtypeStruct((B, M, D), self_vecs.dtype),
        grid=(B, M // TM),
        in_specs=[
            pl.BlockSpec((None, 1, D), lambda bb, mm: (bb, 0, 0)),          # user
            pl.BlockSpec((None, TM, D), lambda bb, mm: (bb, mm, 0)),        # self
            pl.BlockSpec((None, TM, N, D), lambda bb, mm: (bb, mm, 0, 0)),  # nbr
            pl.BlockSpec((None, TM, N, D), lambda bb, mm: (bb, mm, 0, 0)),  # rel
            pl.BlockSpec((D, D), lambda bb, mm: (0, 0)),                    # W (resident)
            pl.BlockSpec((1, D), lambda bb, mm: (0, 0)),                    # b (resident)
        ],
        out_specs=pl.BlockSpec((None, TM, D), lambda bb, mm: (bb, mm, 0)),
        compiler_params=pltpu.CompilerParams(
            dimension_semantics=("parallel", "parallel"),
            vmem_limit_bytes=vmem_limit),
    )(user3, self_vecs, nbr_vecs, rel_vecs, W, b2)


def final_score_call(user_emb, self_vecs, nbr_vecs, rel_vecs, W, b):
    """user/self [B,D]; nbr/rel [B,N,D] -> scores [B] f32 (fused last hop)."""
    B, D = user_emb.shape
    N = nbr_vecs.shape[1]
    in_bytes = self_vecs.dtype.itemsize
    row_bytes = (2 * D + 2 * N * D) * in_bytes + 4
    TB = _pick_row_tile(B, row_bytes)
    vmem_limit = int(min(max(4 * TB * row_bytes + (2 << 20), 8 << 20), 32 << 20))
    b2 = b.reshape(1, D)

    out = pl.pallas_call(
        _final_kernel,
        out_shape=jax.ShapeDtypeStruct((B, 1), jnp.float32),
        grid=(B // TB,),
        in_specs=[
            pl.BlockSpec((TB, D), lambda i: (i, 0)),        # user
            pl.BlockSpec((TB, D), lambda i: (i, 0)),        # self
            pl.BlockSpec((TB, N, D), lambda i: (i, 0, 0)),  # nbr
            pl.BlockSpec((TB, N, D), lambda i: (i, 0, 0)),  # rel
            pl.BlockSpec((D, D), lambda i: (0, 0)),         # W (resident)
            pl.BlockSpec((1, D), lambda i: (0, 0)),         # b (resident)
        ],
        out_specs=pl.BlockSpec((TB, 1), lambda i: (i, 0)),
        compiler_params=pltpu.CompilerParams(
            dimension_semantics=("parallel",),
            vmem_limit_bytes=vmem_limit),
    )(user_emb, self_vecs, nbr_vecs, rel_vecs, W, b2)
    return out.reshape(B)


# ----------------------------------------------------------------------------
# KGCN forward (glue: gathers + hop bookkeeping in plain JAX)
# ----------------------------------------------------------------------------
def kgcn_forward(u, v, params, adj_ent, adj_rel, *, n_iter, n_neighbor, dim):
    assert n_iter >= 1
    B = u.shape[0]
    N, D = n_neighbor, dim
    user_emb = params["usr"][u]                                  # [B, D]

    # _get_neighbors: hop index expansion (glue gathers)
    entities = [v.reshape(B, 1)]
    relations = []
    for h in range(n_iter):
        entities.append(adj_ent[entities[h]].reshape(B, -1))     # [B, N**(h+1)]
        relations.append(adj_rel[entities[h]].reshape(B, -1))

    # Every hop of one iteration runs the identical per-row computation, so
    # all hops are concatenated along the entity-row axis: one embedding
    # gather up front and exactly one pallas_call per iteration.
    m_per_hop = [N ** h for h in range(n_iter + 1)]

    def mtot(k):
        return sum(m_per_hop[:k])

    self_idx = jnp.concatenate([entities[h] for h in range(n_iter)], axis=1)
    nbr_idx = jnp.concatenate([entities[h + 1] for h in range(n_iter)], axis=1)
    rel_idx = jnp.concatenate(relations, axis=1)

    M0 = mtot(n_iter)
    cur_self = params["ent"][self_idx]                           # [B, M0, D]
    cur_nbr = params["ent"][nbr_idx].reshape(B, M0, N, D)
    rel_all = params["rel"][rel_idx].reshape(B, M0, N, D)

    scores = None
    for i in range(n_iter):
        n_hops = n_iter - i
        Mi = mtot(n_hops)
        if i == n_iter - 1:                                      # Mi == 1
            scores = final_score_call(
                user_emb, cur_self[:, 0, :], cur_nbr[:, 0], rel_all[:, 0],
                params["W"], params["b"])
        else:
            out = aggregator_call(cur_self[:, :Mi], cur_nbr[:, :Mi],
                                  rel_all[:, :Mi], user_emb,
                                  params["W"], params["b"], act="sigmoid")
            M_next = mtot(n_hops - 1)
            cur_self = out[:, :M_next]                           # hops 0..n-2
            cur_nbr = out[:, 1:].reshape(B, M_next, N, D)        # hops 1..n-1
    return scores


# ----------------------------------------------------------------------------
# Plain-JAX reference (mirrors the kernel's storage precision) for validation
# ----------------------------------------------------------------------------
def kgcn_reference(u, v, params, adj_ent, adj_rel, *, n_iter, n_neighbor, dim):
    B = u.shape[0]
    N, D = n_neighbor, dim
    f32 = lambda x: x.astype(jnp.float32)
    store = params["ent"].dtype
    user = f32(params["usr"][u])
    W = f32(params["W"])
    bias = f32(params["b"])

    entities = [v.reshape(B, 1)]
    relations = []
    for h in range(n_iter):
        entities.append(adj_ent[entities[h]].reshape(B, -1))
        relations.append(adj_rel[entities[h]].reshape(B, -1))

    ent_vecs = [f32(params["ent"][e]) for e in entities]
    rel_vecs = [f32(params["rel"][r]) for r in relations]

    def agg(self_v, nbr, rel, act):
        s = jnp.sum(user[:, None, None, :] * rel, axis=-1)       # [B, M, N]
        p = jax.nn.softmax(s, axis=-1)
        agg_v = jnp.sum(p[..., None] * nbr, axis=2)              # [B, M, D]
        x = (self_v + agg_v).astype(store).astype(jnp.float32)   # bf16 MXU ops
        y = x @ W + bias
        return jnp.tanh(y) if act == "tanh" else jax.nn.sigmoid(y)

    for i in range(n_iter):
        act = "tanh" if i == n_iter - 1 else "sigmoid"
        nxt = []
        for hop in range(n_iter - i):
            y = agg(ent_vecs[hop],
                    ent_vecs[hop + 1].reshape(B, -1, N, D),
                    rel_vecs[hop].reshape(B, -1, N, D), act)
            if i != n_iter - 1:
                y = f32(y.astype(store))                         # bf16 hop store
            nxt.append(y)
        ent_vecs = nxt
    item = ent_vecs[0].reshape(B, D)
    return jax.nn.sigmoid(jnp.sum(user * item, axis=-1))


# ----------------------------------------------------------------------------
# Deterministic setup + run
# ----------------------------------------------------------------------------
if __name__ == "__main__":
    # small hyperparameters consistent with the module's __init__
    num_user, num_ent, num_rel = 16, 32, 8
    dim = 32
    n_neighbor = 4
    n_iter = 2
    batch_size = 4
    storage_dtype = jnp.bfloat16          # HBM storage / MXU operand dtype

    key = jax.random.PRNGKey(0)
    k_usr, k_ent, k_rel, k_w, k_b, k_ae, k_ar, k_u, k_v = jax.random.split(key, 9)

    params = {
        "usr": (jax.random.normal(k_usr, (num_user, dim), jnp.float32) * 0.1
                ).astype(storage_dtype),
        "ent": (jax.random.normal(k_ent, (num_ent, dim), jnp.float32) * 0.1
                ).astype(storage_dtype),
        "rel": (jax.random.normal(k_rel, (num_rel, dim), jnp.float32) * 0.1
                ).astype(storage_dtype),
        # Aggregator's Linear(dim, dim)
        "W": (jax.random.normal(k_w, (dim, dim), jnp.float32) * 0.1
              ).astype(storage_dtype),
        "b": jax.random.normal(k_b, (dim,), jnp.float32) * 0.1,   # bias in f32
    }

    # synthetic fixed-size adjacency (replaces _gen_adj's random KG sampling)
    adj_ent = jax.random.randint(k_ae, (num_ent, n_neighbor), 0, num_ent,
                                 dtype=jnp.int32)
    adj_rel = jax.random.randint(k_ar, (num_ent, n_neighbor), 0, num_rel,
                                 dtype=jnp.int32)

    u = jax.random.randint(k_u, (batch_size,), 0, num_user, dtype=jnp.int32)
    v = jax.random.randint(k_v, (batch_size,), 0, num_ent, dtype=jnp.int32)

    # TODO(synk): the 'mixer' option of the (unshown) Aggregator has no
    # reference implementation here; the canonical KGCN 'sum' aggregator with
    # user-relation attention is implemented.
    fwd = jax.jit(functools.partial(kgcn_forward, n_iter=n_iter,
                                    n_neighbor=n_neighbor, dim=dim))
    scores = jax.block_until_ready(fwd(u, v, params, adj_ent, adj_rel))
    ref = kgcn_reference(u, v, params, adj_ent, adj_rel,
                         n_iter=n_iter, n_neighbor=n_neighbor, dim=dim)

    assert scores.shape == (batch_size,)
    assert bool(jnp.all(jnp.isfinite(scores)))
    assert bool(jnp.allclose(scores, ref, atol=2e-2, rtol=2e-2)), (scores, ref)
    print("KERNEL_OK")
</pallas_src>

<mosaic_0001>
module attributes {stable_mosaic.version = 11 : i64} {
  func.func @_agg_kernel(%arg0: i32, %arg1: i32, %arg2: memref<1x1x32xbf16, #tpu.memory_space<vmem>>, %arg3: memref<1x5x32xbf16, #tpu.memory_space<vmem>>, %arg4: memref<1x5x4x32xbf16, #tpu.memory_space<vmem>>, %arg5: memref<1x5x4x32xbf16, #tpu.memory_space<vmem>>, %arg6: memref<32x32xbf16, #tpu.memory_space<vmem>>, %arg7: memref<1x32xf32, #tpu.memory_space<vmem>>, %arg8: memref<1x5x32xbf16, #tpu.memory_space<vmem>>) attributes {dimension_semantics = [#tpu.dimension_semantics<parallel>, #tpu.dimension_semantics<parallel>], iteration_bounds = array<i64: 4, 1>, scalar_prefetch = 0 : i64, scratch_operands = 0 : i64, tpu.core_type = #tpu.core_type<tc>, window_params = [{transform_indices = @transform_0, window_bounds = array<i64: 1, 1, 32>}, {transform_indices = @transform_1, window_bounds = array<i64: 1, 5, 32>}, {transform_indices = @transform_2, window_bounds = array<i64: 1, 5, 4, 32>}, {transform_indices = @transform_3, window_bounds = array<i64: 1, 5, 4, 32>}, {pipeline_mode = #tpu.pipeline_mode<synchronous>, transform_indices = @transform_4, window_bounds = array<i64: 32, 32>}, {pipeline_mode = #tpu.pipeline_mode<synchronous>, transform_indices = @transform_5, window_bounds = array<i64: 1, 32>}, {transform_indices = @transform_6, window_bounds = array<i64: 1, 5, 32>}]} {
    %c0 = arith.constant 0 : index
    %c0_0 = arith.constant 0 : index
    %c0_1 = arith.constant 0 : index
    %0 = vector.load %arg2[%c0, %c0_0, %c0_1] : memref<1x1x32xbf16, #tpu.memory_space<vmem>>, vector<1x1x32xbf16>
    %1 = vector.shape_cast %0 : vector<1x1x32xbf16> to vector<1x32xbf16>
    %2 = arith.extf %1 : vector<1x32xbf16> to vector<1x32xf32>
    %c0_2 = arith.constant 0 : index
    %c0_3 = arith.constant 0 : index
    %c0_4 = arith.constant 0 : index
    %3 = vector.load %arg3[%c0_2, %c0_3, %c0_4] : memref<1x5x32xbf16, #tpu.memory_space<vmem>>, vector<1x5x32xbf16>
    %4 = vector.shape_cast %3 : vector<1x5x32xbf16> to vector<5x32xbf16>
    %5 = arith.extf %4 : vector<5x32xbf16> to vector<5x32xf32>
    %c0_5 = arith.constant 0 : index
    %c0_6 = arith.constant 0 : index
    %c0_7 = arith.constant 0 : index
    %c0_8 = arith.constant 0 : index
    %6 = vector.load %arg4[%c0_5, %c0_6, %c0_7, %c0_8] : memref<1x5x4x32xbf16, #tpu.memory_space<vmem>>, vector<1x5x4x32xbf16>
    %7 = vector.shape_cast %6 : vector<1x5x4x32xbf16> to vector<5x4x32xbf16>
    %8 = arith.extf %7 : vector<5x4x32xbf16> to vector<5x4x32xf32>
    %c0_9 = arith.constant 0 : index
    %c0_10 = arith.constant 0 : index
    %c0_11 = arith.constant 0 : index
    %c0_12 = arith.constant 0 : index
    %9 = vector.load %arg5[%c0_9, %c0_10, %c0_11, %c0_12] : memref<1x5x4x32xbf16, #tpu.memory_space<vmem>>, vector<1x5x4x32xbf16>
    %10 = vector.shape_cast %9 : vector<1x5x4x32xbf16> to vector<5x4x32xbf16>
    %11 = arith.extf %10 : vector<5x4x32xbf16> to vector<5x4x32xf32>
    %12 = vector.shape_cast %2 : vector<1x32xf32> to vector<1x1x32xf32>
    %13 = vector.broadcast %12 : vector<1x1x32xf32> to vector<5x4x32xf32>
    %14 = arith.mulf %13, %11 : vector<5x4x32xf32>
    %cst = arith.constant dense<0.000000e+00> : vector<5x4xf32>
    %15 = vector.multi_reduction <add>, %14, %cst [2] : vector<5x4x32xf32> to vector<5x4xf32>
    %cst_13 = arith.constant dense<0xFF800000> : vector<5xf32>
    %16 = vector.multi_reduction <maximumf>, %15, %cst_13 [1] : vector<5x4xf32> to vector<5xf32>
    %17 = vector.shape_cast %16 : vector<5xf32> to vector<5x1xf32>
    %18 = vector.broadcast %17 : vector<5x1xf32> to vector<5x4xf32>
    %19 = arith.subf %15, %18 : vector<5x4xf32>
    %20 = math.exp %19 : vector<5x4xf32>
    %cst_14 = arith.constant dense<0.000000e+00> : vector<5xf32>
    %21 = vector.multi_reduction <add>, %20, %cst_14 [1] : vector<5x4xf32> to vector<5xf32>
    %22 = vector.shape_cast %21 : vector<5xf32> to vector<5x1xf32>
    %23 = tpu.reciprocal %22 {approx = true} : vector<5x1xf32> -> vector<5x1xf32>
    %24 = vector.broadcast %23 : vector<5x1xf32> to vector<5x4xf32>
    %25 = arith.mulf %20, %24 : vector<5x4xf32>
    %26 = vector.shape_cast %25 : vector<5x4xf32> to vector<5x4x1xf32>
    %27 = vector.broadcast %26 : vector<5x4x1xf32> to vector<5x4x32xf32>
    %28 = arith.mulf %27, %8 : vector<5x4x32xf32>
    %cst_15 = arith.constant dense<0.000000e+00> : vector<5x32xf32>
    %29 = vector.multi_reduction <add>, %28, %cst_15 [1] : vector<5x4x32xf32> to vector<5x32xf32>
    %30 = arith.addf %5, %29 : vector<5x32xf32>
    %31 = arith.truncf %30 : vector<5x32xf32> to vector<5x32xbf16>
    %c0_16 = arith.constant 0 : index
    %c0_17 = arith.constant 0 : index
    %32 = vector.load %arg6[%c0_16, %c0_17] : memref<32x32xbf16, #tpu.memory_space<vmem>>, vector<32x32xbf16>
    %cst_18 = arith.constant dense<0.000000e+00> : vector<5x32xf32>
    %33 = tpu.matmul %31, %32, %cst_18 {dimension_numbers = #tpu.dot_dimension_numbers<[1], [0], [0], [1], [0, 0, 1, 1], [], []>} : vector<5x32xbf16>, vector<32x32xbf16>, vector<5x32xf32> -> vector<5x32xf32>
    %c0_19 = arith.constant 0 : index
    %c0_20 = arith.constant 0 : index
    %34 = vector.load %arg7[%c0_19, %c0_20] : memref<1x32xf32, #tpu.memory_space<vmem>>, vector<1x32xf32>
    %35 = vector.broadcast %34 : vector<1x32xf32> to vector<5x32xf32>
    %36 = arith.addf %33, %35 : vector<5x32xf32>
    %37 = arith.negf %36 : vector<5x32xf32>
    %38 = math.exp %37 : vector<5x32xf32>
    %cst_21 = arith.constant 1.000000e+00 : f32
    %39 = vector.broadcast %cst_21 : f32 to vector<5x32xf32>
    %40 = arith.addf %39, %38 : vector<5x32xf32>
    %41 = arith.divf %39, %40 : vector<5x32xf32>
    %42 = arith.truncf %41 : vector<5x32xf32> to vector<5x32xbf16>
    %c0_22 = arith.constant 0 : index
    %c0_23 = arith.constant 0 : index
    %c0_24 = arith.constant 0 : index
    %43 = vector.load %arg8[%c0_22, %c0_23, %c0_24] : memref<1x5x32xbf16, #tpu.memory_space<vmem>>, vector<1x5x32xbf16>
    %44 = vector.shape_cast %43 : vector<1x5x32xbf16> to vector<5x32xbf16>
    %45 = vector.shape_cast %42 : vector<5x32xbf16> to vector<1x5x32xbf16>
    tpu.vector_store %arg8[%c0_22, %c0_23, %c0_24], %45 {strides = array<i32>} : memref<1x5x32xbf16, #tpu.memory_space<vmem>>, vector<1x5x32xbf16>,
    return
  }
  func.func @transform_0(%arg0: i32, %arg1: i32) -> (i32, i32, i32) {
    %c0_i32 = arith.constant 0 : i32
    %c0_i32_0 = arith.constant 0 : i32
    %c0_i32_1 = arith.constant 0 : i32
    return %arg0, %c0_i32, %c0_i32_0 : i32, i32, i32
  }
  func.func @transform_1(%arg0: i32, %arg1: i32) -> (i32, i32, i32) {
    %c0_i32 = arith.constant 0 : i32
    %c0_i32_0 = arith.constant 0 : i32
    return %arg0, %arg1, %c0_i32 : i32, i32, i32
  }
  func.func @transform_2(%arg0: i32, %arg1: i32) -> (i32, i32, i32, i32) {
    %c0_i32 = arith.constant 0 : i32
    %c0_i32_0 = arith.constant 0 : i32
    %c0_i32_1 = arith.constant 0 : i32
    return %arg0, %arg1, %c0_i32, %c0_i32_0 : i32, i32, i32, i32
  }
  func.func @transform_3(%arg0: i32, %arg1: i32) -> (i32, i32, i32, i32) {
    %c0_i32 = arith.constant 0 : i32
    %c0_i32_0 = arith.constant 0 : i32
    %c0_i32_1 = arith.constant 0 : i32
    return %arg0, %arg1, %c0_i32, %c0_i32_0 : i32, i32, i32, i32
  }
  func.func @transform_4(%arg0: i32, %arg1: i32) -> (i32, i32) {
    %c0_i32 = arith.constant 0 : i32
    %c0_i32_0 = arith.constant 0 : i32
    %c0_i32_1 = arith.constant 0 : i32
    return %c0_i32, %c0_i32_0 : i32, i32
  }
  func.func @transform_5(%arg0: i32, %arg1: i32) -> (i32, i32) {
    %c0_i32 = arith.constant 0 : i32
    %c0_i32_0 = arith.constant 0 : i32
    %c0_i32_1 = arith.constant 0 : i32
    return %c0_i32, %c0_i32_0 : i32, i32
  }
  func.func @transform_6(%arg0: i32, %arg1: i32) -> (i32, i32, i32) {
    %c0_i32 = arith.constant 0 : i32
    %c0_i32_0 = arith.constant 0 : i32
    return %arg0, %arg1, %c0_i32 : i32, i32, i32
  }
}

module attributes {stable_mosaic.version = 11 : i64} {
  func.func @_final_kernel(%arg0: i32, %arg1: memref<4x32xbf16, #tpu.memory_space<vmem>>, %arg2: memref<4x32xbf16, #tpu.memory_space<vmem>>, %arg3: memref<4x4x32xbf16, #tpu.memory_space<vmem>>, %arg4: memref<4x4x32xbf16, #tpu.memory_space<vmem>>, %arg5: memref<32x32xbf16, #tpu.memory_space<vmem>>, %arg6: memref<1x32xf32, #tpu.memory_space<vmem>>, %arg7: memref<4x1xf32, #tpu.memory_space<vmem>>) attributes {dimension_semantics = [#tpu.dimension_semantics<parallel>], iteration_bounds = array<i64: 1>, scalar_prefetch = 0 : i64, scratch_operands = 0 : i64, tpu.core_type = #tpu.core_type<tc>, window_params = [{transform_indices = @transform_0, window_bounds = array<i64: 4, 32>}, {transform_indices = @transform_1, window_bounds = array<i64: 4, 32>}, {transform_indices = @transform_2, window_bounds = array<i64: 4, 4, 32>}, {transform_indices = @transform_3, window_bounds = array<i64: 4, 4, 32>}, {pipeline_mode = #tpu.pipeline_mode<synchronous>, transform_indices = @transform_4, window_bounds = array<i64: 32, 32>}, {pipeline_mode = #tpu.pipeline_mode<synchronous>, transform_indices = @transform_5, window_bounds = array<i64: 1, 32>}, {transform_indices = @transform_6, window_bounds = array<i64: 4, 1>}]} {
    %c0 = arith.constant 0 : index
    %c0_0 = arith.constant 0 : index
    %0 = vector.load %arg1[%c0, %c0_0] : memref<4x32xbf16, #tpu.memory_space<vmem>>, vector<4x32xbf16>
    %1 = arith.extf %0 : vector<4x32xbf16> to vector<4x32xf32>
    %c0_1 = arith.constant 0 : index
    %c0_2 = arith.constant 0 : index
    %2 = vector.load %arg2[%c0_1, %c0_2] : memref<4x32xbf16, #tpu.memory_space<vmem>>, vector<4x32xbf16>
    %3 = arith.extf %2 : vector<4x32xbf16> to vector<4x32xf32>
    %c0_3 = arith.constant 0 : index
    %c0_4 = arith.constant 0 : index
    %c0_5 = arith.constant 0 : index
    %4 = vector.load %arg3[%c0_3, %c0_4, %c0_5] : memref<4x4x32xbf16, #tpu.memory_space<vmem>>, vector<4x4x32xbf16>
    %5 = arith.extf %4 : vector<4x4x32xbf16> to vector<4x4x32xf32>
    %c0_6 = arith.constant 0 : index
    %c0_7 = arith.constant 0 : index
    %c0_8 = arith.constant 0 : index
    %6 = vector.load %arg4[%c0_6, %c0_7, %c0_8] : memref<4x4x32xbf16, #tpu.memory_space<vmem>>, vector<4x4x32xbf16>
    %7 = arith.extf %6 : vector<4x4x32xbf16> to vector<4x4x32xf32>
    %8 = vector.shape_cast %1 : vector<4x32xf32> to vector<4x1x32xf32>
    %9 = vector.broadcast %8 : vector<4x1x32xf32> to vector<4x4x32xf32>
    %10 = arith.mulf %9, %7 : vector<4x4x32xf32>
    %cst = arith.constant dense<0.000000e+00> : vector<4x4xf32>
    %11 = vector.multi_reduction <add>, %10, %cst [2] : vector<4x4x32xf32> to vector<4x4xf32>
    %cst_9 = arith.constant dense<0xFF800000> : vector<4xf32>
    %12 = vector.multi_reduction <maximumf>, %11, %cst_9 [1] : vector<4x4xf32> to vector<4xf32>
    %13 = vector.shape_cast %12 : vector<4xf32> to vector<4x1xf32>
    %14 = vector.broadcast %13 : vector<4x1xf32> to vector<4x4xf32>
    %15 = arith.subf %11, %14 : vector<4x4xf32>
    %16 = math.exp %15 : vector<4x4xf32>
    %cst_10 = arith.constant dense<0.000000e+00> : vector<4xf32>
    %17 = vector.multi_reduction <add>, %16, %cst_10 [1] : vector<4x4xf32> to vector<4xf32>
    %18 = vector.shape_cast %17 : vector<4xf32> to vector<4x1xf32>
    %19 = tpu.reciprocal %18 {approx = true} : vector<4x1xf32> -> vector<4x1xf32>
    %20 = vector.broadcast %19 : vector<4x1xf32> to vector<4x4xf32>
    %21 = arith.mulf %16, %20 : vector<4x4xf32>
    %22 = vector.shape_cast %21 : vector<4x4xf32> to vector<4x4x1xf32>
    %23 = vector.broadcast %22 : vector<4x4x1xf32> to vector<4x4x32xf32>
    %24 = arith.mulf %23, %5 : vector<4x4x32xf32>
    %cst_11 = arith.constant dense<0.000000e+00> : vector<4x32xf32>
    %25 = vector.multi_reduction <add>, %24, %cst_11 [1] : vector<4x4x32xf32> to vector<4x32xf32>
    %26 = arith.addf %3, %25 : vector<4x32xf32>
    %27 = arith.truncf %26 : vector<4x32xf32> to vector<4x32xbf16>
    %c0_12 = arith.constant 0 : index
    %c0_13 = arith.constant 0 : index
    %28 = vector.load %arg5[%c0_12, %c0_13] : memref<32x32xbf16, #tpu.memory_space<vmem>>, vector<32x32xbf16>
    %cst_14 = arith.constant dense<0.000000e+00> : vector<4x32xf32>
    %29 = tpu.matmul %27, %28, %cst_14 {dimension_numbers = #tpu.dot_dimension_numbers<[1], [0], [0], [1], [0, 0, 1, 1], [], []>} : vector<4x32xbf16>, vector<32x32xbf16>, vector<4x32xf32> -> vector<4x32xf32>
    %c0_15 = arith.constant 0 : index
    %c0_16 = arith.constant 0 : index
    %30 = vector.load %arg6[%c0_15, %c0_16] : memref<1x32xf32, #tpu.memory_space<vmem>>, vector<1x32xf32>
    %31 = vector.broadcast %30 : vector<1x32xf32> to vector<4x32xf32>
    %32 = arith.addf %29, %31 : vector<4x32xf32>
    %33 = math.tanh %32 : vector<4x32xf32>
    %34 = arith.mulf %1, %33 : vector<4x32xf32>
    %cst_17 = arith.constant dense<0.000000e+00> : vector<4xf32>
    %35 = vector.multi_reduction <add>, %34, %cst_17 [1] : vector<4x32xf32> to vector<4xf32>
    %36 = vector.shape_cast %35 : vector<4xf32> to vector<4x1xf32>
    %37 = arith.negf %36 : vector<4x1xf32>
    %38 = math.exp %37 : vector<4x1xf32>
    %cst_18 = arith.constant 1.000000e+00 : f32
    %39 = vector.broadcast %cst_18 : f32 to vector<4x1xf32>
    %40 = arith.addf %39, %38 : vector<4x1xf32>
    %41 = arith.divf %39, %40 : vector<4x1xf32>
    %c0_19 = arith.constant 0 : index
    %c0_20 = arith.constant 0 : index
    %42 = vector.load %arg7[%c0_19, %c0_20] : memref<4x1xf32, #tpu.memory_space<vmem>>, vector<4x1xf32>
    tpu.vector_store %arg7[%c0_19, %c0_20], %41 {strides = array<i32>} : memref<4x1xf32, #tpu.memory_space<vmem>>, vector<4x1xf32>,
    return
  }
  func.func @transform_0(%arg0: i32) -> (i32, i32) {
    %c0_i32 = arith.constant 0 : i32
    %c0_i32_0 = arith.constant 0 : i32
    return %arg0, %c0_i32 : i32, i32
  }
  func.func @transform_1(%arg0: i32) -> (i32, i32) {
    %c0_i32 = arith.constant 0 : i32
    %c0_i32_0 = arith.constant 0 : i32
    return %arg0, %c0_i32 : i32, i32
  }
  func.func @transform_2(%arg0: i32) -> (i32, i32, i32) {
    %c0_i32 = arith.constant 0 : i32
    %c0_i32_0 = arith.constant 0 : i32
    %c0_i32_1 = arith.constant 0 : i32
    return %arg0, %c0_i32, %c0_i32_0 : i32, i32, i32
  }
  func.func @transform_3(%arg0: i32) -> (i32, i32, i32) {
    %c0_i32 = arith.constant 0 : i32
    %c0_i32_0 = arith.constant 0 : i32
    %c0_i32_1 = arith.constant 0 : i32
    return %arg0, %c0_i32, %c0_i32_0 : i32, i32, i32
  }
  func.func @transform_4(%arg0: i32) -> (i32, i32) {
    %c0_i32 = arith.constant 0 : i32
    %c0_i32_0 = arith.constant 0 : i32
    %c0_i32_1 = arith.constant 0 : i32
    return %c0_i32, %c0_i32_0 : i32, i32
  }
  func.func @transform_5(%arg0: i32) -> (i32, i32) {
    %c0_i32 = arith.constant 0 : i32
    %c0_i32_0 = arith.constant 0 : i32
    %c0_i32_1 = arith.constant 0 : i32
    return %c0_i32, %c0_i32_0 : i32, i32
  }
  func.func @transform_6(%arg0: i32) -> (i32, i32) {
    %c0_i32 = arith.constant 0 : i32
    %c0_i32_0 = arith.constant 0 : i32
    return %arg0, %c0_i32 : i32, i32
  }
}

</mosaic_0001>

<llo_original>
// kernel: kgcn_forward.3
$region0: #{kgcn_forward.3}
  #allocation0 [shape = 'u32[]', space=smem, size = 0x4, offset = 0x4, fixed_abs, tag = 'smem constant byte address 0x4 - core index']
  #allocation1 [shape = 'u32[144,128]{1,0:T(1,128)}', space=vmem, size = 0x12000, scoped, tag = 'internal scratch']
  %s0 = inlined_call_operand.vmem [shape: bf16[4,32], index: 0, kind: input, shape index: {}]
  %s1 = inlined_call_operand.vmem [shape: bf16[4,32], index: 1, kind: input, shape index: {}]
  %s2 = inlined_call_operand.vmem [shape: bf16[4,4,32], index: 2, kind: input, shape index: {}]
  %s3 = inlined_call_operand.vmem [shape: bf16[4,4,32], index: 3, kind: input, shape index: {}]
  %s4 = inlined_call_operand.vmem [shape: bf16[32,32], index: 4, kind: input, shape index: {}]
  %s5 = inlined_call_operand.vmem [shape: f32[1,32], index: 5, kind: input, shape index: {}]
  %s6 = inlined_call_operand.vmem [shape: f32[4,1], index: 6, kind: output, shape index: {}]
  %s7 = sld [smem:[#allocation0]]
  $region34: #{kgcn_forward.3} parent=0
    _
  %s9 = ssub.s32 1, %s7
  %s10 = scalar_select 0, %s9, %s7
  // Predicated region
  $region2: #{kgcn_forward.3} parent=0 // pred_check
    _
  $region3: #{kgcn_forward.3} parent=0 // pred_check_branch
    %12 = sbr.rel (0) target = $region5
  $region4: #{kgcn_forward.3} parent=0 // pred_region
    _
  $region5: #{kgcn_forward.3} parent=0 // pred_fallthru
    _
  // Predicated region
  $region6: #{kgcn_forward.3} parent=0 // pred_check
    _
  $region7: #{kgcn_forward.3} parent=0 // pred_check_branch
    %14 = sbr.rel (0) target = $region9
  $region8: #{kgcn_forward.3} parent=0 // pred_region
    _
  $region9: #{kgcn_forward.3} parent=0 // pred_fallthru
    _
  // Predicated region
  $region10: #{kgcn_forward.3} parent=0 // pred_check
    _
  $region11: #{kgcn_forward.3} parent=0 // pred_check_branch
    %16 = sbr.rel (0) target = $region13
  $region12: #{kgcn_forward.3} parent=0 // pred_region
    _
  $region13: #{kgcn_forward.3} parent=0 // pred_fallthru
    _
  // Predicated region
  $region14: #{kgcn_forward.3} parent=0 // pred_check
    _
  $region15: #{kgcn_forward.3} parent=0 // pred_check_branch
    %18 = sbr.rel (0) target = $region17
  $region16: #{kgcn_forward.3} parent=0 // pred_region
    _
  $region17: #{kgcn_forward.3} parent=0 // pred_fallthru
    _
  // Predicated region
  $region18: #{kgcn_forward.3} parent=0 // pred_check
    _
  $region19: #{kgcn_forward.3} parent=0 // pred_check_branch
    %20 = sbr.rel (0) target = $region21
  $region20: #{kgcn_forward.3} parent=0 // pred_region
    _
  $region21: #{kgcn_forward.3} parent=0 // pred_fallthru
    _
  // Predicated region
  $region22: #{kgcn_forward.3} parent=0 // pred_check
    _
  $region23: #{kgcn_forward.3} parent=0 // pred_check_branch
    %22 = sbr.rel (0) target = $region25
  $region24: #{kgcn_forward.3} parent=0 // pred_region
    _
  $region25: #{kgcn_forward.3} parent=0 // pred_fallthru
    _
  %v24 = vld [vmem:[%s0] sm:$0x3]
  %v25 = vunpack.c.l.bf16 %v24
  %v26 = vld [vmem:[%s1] sm:$0x3]
  %v27 = vunpack.c.l.bf16 %v26
  %v28 = vld [vmem:[%s2] sm:$0x3]
  %v29 = vld [vmem:[%s2 + $0x2] sm:$0x3]
  %v30 = vld [vmem:[%s2 + $0x4] sm:$0x3]
  %v31 = vld [vmem:[%s2 + $0x6] sm:$0x3]
  %v32 = vunpack.c.l.bf16 %v28
  %v33 = vunpack.c.l.bf16 %v29
  %v34 = vunpack.c.l.bf16 %v30
  %v35 = vunpack.c.l.bf16 %v31
  %v36 = vld [vmem:[%s3] sm:$0x3]
  %v37 = vld [vmem:[%s3 + $0x2] sm:$0x3]
  %v38 = vld [vmem:[%s3 + $0x4] sm:$0x3]
  %v39 = vld [vmem:[%s3 + $0x6] sm:$0x3]
  %v40 = vunpack.c.l.bf16 %v36
  %v41 = vunpack.c.l.bf16 %v37
  %v42 = vunpack.c.l.bf16 %v38
  %v43 = vunpack.c.l.bf16 %v39
  %v46 = vunpack.c.l.s4 1966171168
  %v47 = vunpack.c.0.s8 %v46
  %v48 = vlaneseq
  %v49 = vshrl.u32 %v48, 7
  %v50 = vsub.s32 %v47, %v49
  %v51 = vrot.slane %v25, %v50
  %v52 = vcombine.high %v51, %v51
  %v54 = vunpack.c.l.s4 1966171168
  %v55 = vunpack.c.0.s8 %v54
  %v56 = vlaneseq
  %v57 = vshrl.u32 %v56, 7
  %v58 = vsub.s32 %v55, %v57
  %v59 = vrot.slane %v51, %v58
  %v61 = vunpack.c.l.s4 1966171168
  %v62 = vunpack.c.0.s8 %v61
  %v63 = vlaneseq
  %v64 = vshrl.u32 %v63, 7
  %v65 = vsub.s32 %v62, %v64
  %v66 = vrot.slane %v52, %v65
  %v67 = vcombine.high %v59, %v59
  %v68 = vcombine.high %v66, %v66
  %v69 = vlaneseq
  %v70 = vshrl.u32 %v69, 7
  %v71 = vsub.s32 0, %v70
  %v72 = vrot.slane %v59, %v71
  %v73 = vlaneseq
  %v74 = vshrl.u32 %v73, 7
  %v75 = vsub.s32 0, %v74
  %v76 = vrot.slane %v66, %v75
  %v77 = vlaneseq
  %v78 = vshrl.u32 %v77, 7
  %v79 = vsub.s32 0, %v78
  %v80 = vrot.slane %v67, %v79
  %v81 = vlaneseq
  %v82 = vshrl.u32 %v81, 7
  %v83 = vsub.s32 0, %v82
  %v84 = vrot.slane %v68, %v83
  %v89 = vmul.f32 %v72, %v40
  %v90 = vmul.f32 %v76, %v41
  %v91 = vmul.f32 %v80, %v42
  %v92 = vmul.f32 %v84, %v43
  %vm93 = vcmask 257024
  %v94 = vsel %vm93, %v89, 0.0
  %95 = vadd.xlane.f32.xlu0 %v94
  %v96 = vpop.xlane.xlu0 %95
  %v97 = vsel %vm93, %v90, 0.0
  %98 = vadd.xlane.f32.xlu0 %v97
  %v99 = vpop.xlane.xlu0 %98
  %v100 = vsel %vm93, %v91, 0.0
  %101 = vadd.xlane.f32.xlu0 %v100
  %v102 = vpop.xlane.xlu0 %101
  %v103 = vsel %vm93, %v92, 0.0
  %104 = vadd.xlane.f32.xlu0 %v103
  %v105 = vpop.xlane.xlu0 %104
  %v110 = vlaneseq
  %v111 = vand.u32 %v110, 127
  %v112 = vlaneseq
  %v113 = vshrl.u32 %v112, 7
  %v114 = vsub.s32 %v111, %v113
  %v115 = vrot.slane %v96, %v114
  %v116 = vlaneseq
  %v117 = vshrl.u32 %v116, 7
  %v118 = vsub.s32 %v111, %v117
  %v119 = vrot.slane %v99, %v118
  %v120 = vlaneseq
  %v121 = vshrl.u32 %v120, 7
  %v122 = vsub.s32 %v111, %v121
  %v123 = vrot.slane %v102, %v122
  %v124 = vlaneseq
  %v125 = vshrl.u32 %v124, 7
  %v126 = vsub.s32 %v111, %v125
  %v127 = vrot.slane %v105, %v126
  %vm128 = vcmask 1041409
  %v129 = vsel %vm128, %v119, %v115
  %vm130 = vcmask 1042434
  %v131 = vsel %vm130, %v123, %v129
  %vm132 = vcmask 1043459
  %v133 = vsel %vm132, %v127, %v131
  %vm135 = vcmask 27648
  %v136 = vsel %vm135, %v133, -inf
  %137 = vmax.xlane.f32.xlu0 %v136
  %v138 = vpop.xlane.xlu0 %137
  %v140 = vlaneseq
  %v141 = vshrl.u32 %v140, 7
  %v142 = vsub.s32 0, %v141
  %v143 = vrot.slane %v138, %v142
  %v144 = vlaneseq
  %v145 = vshrl.u32 %v144, 7
  %v146 = vsub.s32 1, %v145
  %v147 = vrot.slane %v138, %v146
  %v148 = vlaneseq
  %v149 = vshrl.u32 %v148, 7
  %v150 = vsub.s32 2, %v149
  %v151 = vrot.slane %v138, %v150
  %v152 = vlaneseq
  %v153 = vshrl.u32 %v152, 7
  %v154 = vsub.s32 3, %v153
  %v155 = vrot.slane %v138, %v154
  %v160 = vsub.f32 %v96, %v143
  %v161 = vsub.f32 %v99, %v147
  %v162 = vsub.f32 %v102, %v151
  %v163 = vsub.f32 %v105, %v155
  %v164 = vmul.f32 %v160, 1.442695
  %v165 = vpow.pop %v164
  %v166 = vmul.f32 %v161, 1.442695
  %v167 = vpow.pop %v166
  %v168 = vmul.f32 %v162, 1.442695
  %v169 = vpow.pop %v168
  %v170 = vmul.f32 %v163, 1.442695
  %v171 = vpow.pop %v170
  %176 = vset.pattern.permute.xlu0 0
  %177 = vperm.xlu0 %176, %v165
  %v178 = vpop.permute.xlu0 %177
  %179 = vset.pattern.permute.xlu0 0
  %180 = vperm.xlu0 %179, %v167
  %v181 = vpop.permute.xlu0 %180
  %182 = vset.pattern.permute.xlu0 0
  %183 = vperm.xlu0 %182, %v169
  %v184 = vpop.permute.xlu0 %183
  %185 = vset.pattern.permute.xlu0 0
  %186 = vperm.xlu0 %185, %v171
  %v187 = vpop.permute.xlu0 %186
  %v188 = vlaneseq
  %v189 = vshrl.u32 %v188, 7
  %v190 = vsub.s32 %v111, %v189
  %v191 = vrot.slane %v178, %v190
  %v192 = vlaneseq
  %v193 = vshrl.u32 %v192, 7
  %v194 = vsub.s32 %v111, %v193
  %v195 = vrot.slane %v181, %v194
  %v196 = vlaneseq
  %v197 = vshrl.u32 %v196, 7
  %v198 = vsub.s32 %v111, %v197
  %v199 = vrot.slane %v184, %v198
  %v200 = vlaneseq
  %v201 = vshrl.u32 %v200, 7
  %v202 = vsub.s32 %v111, %v201
  %v203 = vrot.slane %v187, %v202
  %v204 = vsel %vm128, %v195, %v191
  %v205 = vsel %vm130, %v199, %v204
  %v206 = vsel %vm132, %v203, %v205
  %v208 = vsel %vm135, %v206, 0.0
  %209 = vadd.xlane.f32.xlu0 %v208
  %v210 = vpop.xlane.xlu0 %209
  %v211 = vrcp.pop %v210
  %v213 = vlaneseq
  %v214 = vshrl.u32 %v213, 7
  %v215 = vsub.s32 0, %v214
  %v216 = vrot.slane %v211, %v215
  %v217 = vlaneseq
  %v218 = vshrl.u32 %v217, 7
  %v219 = vsub.s32 1, %v218
  %v220 = vrot.slane %v211, %v219
  %v221 = vlaneseq
  %v222 = vshrl.u32 %v221, 7
  %v223 = vsub.s32 2, %v222
  %v224 = vrot.slane %v211, %v223
  %v225 = vlaneseq
  %v226 = vshrl.u32 %v225, 7
  %v227 = vsub.s32 3, %v226
  %v228 = vrot.slane %v211, %v227
  %v233 = vmul.f32 %v165, %v216
  %v234 = vmul.f32 %v167, %v220
  %v235 = vmul.f32 %v169, %v224
  %v236 = vmul.f32 %v171, %v228
  %238 = vset.pattern.permute.xlu0 0
  %239 = vperm.xlu0 %238, %v233
  %v240 = vpop.permute.xlu0 %239
  %243 = vset.pattern.permute.xlu0 0
  %244 = vperm.xlu0 %243, %v234
  %v245 = vpop.permute.xlu0 %244
  %248 = vset.pattern.permute.xlu0 0
  %249 = vperm.xlu0 %248, %v235
  %v250 = vpop.permute.xlu0 %249
  %253 = vset.pattern.permute.xlu0 0
  %254 = vperm.xlu0 %253, %v236
  %v255 = vpop.permute.xlu0 %254
  %v257 = vmul.f32 %v240, %v32
  %v258 = vmul.f32 %v245, %v33
  %v259 = vmul.f32 %v250, %v34
  %v260 = vmul.f32 %v255, %v35
  %v261 = vsel %vm93, %v257, 0.0
  %v262 = vrot.slane %v261, 4
  %v263 = vadd.f32 %v261, %v262
  %v264 = vrot.slane %v263, 2
  %v265 = vadd.f32 %v263, %v264
  %v266 = vrot.slane %v265, 1
  %v267 = vadd.f32 %v265, %v266
  %v268 = vsel %vm93, %v258, 0.0
  %v269 = vrot.slane %v268, 4
  %v270 = vadd.f32 %v268, %v269
  %v271 = vrot.slane %v270, 2
  %v272 = vadd.f32 %v270, %v271
  %v273 = vrot.slane %v272, 1
  %v274 = vadd.f32 %v272, %v273
  %v275 = vsel %vm93, %v259, 0.0
  %v276 = vrot.slane %v275, 4
  %v277 = vadd.f32 %v275, %v276
  %v278 = vrot.slane %v277, 2
  %v279 = vadd.f32 %v277, %v278
  %v280 = vrot.slane %v279, 1
  %v281 = vadd.f32 %v279, %v280
  %v282 = vsel %vm93, %v260, 0.0
  %v283 = vrot.slane %v282, 4
  %v284 = vadd.f32 %v282, %v283
  %v285 = vrot.slane %v284, 2
  %v286 = vadd.f32 %v284, %v285
  %v287 = vrot.slane %v286, 1
  %v288 = vadd.f32 %v286, %v287
  %v293 = vrot.slane %v274, 7
  %v294 = vsel %vm128, %v293, %v267
  %vm295 = vcmask 1045509
  %v296 = vsel %vm295, %v293, %v294
  %v297 = vrot.slane %v281, 6
  %v298 = vsel %vm130, %v297, %v296
  %vm299 = vcmask 1046534
  %v300 = vsel %vm299, %v297, %v298
  %v301 = vrot.slane %v288, 5
  %v302 = vsel %vm132, %v301, %v300
  %vm303 = vcmask 1047559
  %v304 = vsel %vm303, %v301, %v302
  %v306 = vadd.f32 %v27, %v304
  %v307 = vpack.c.bf16 %v306, %v306
  %v308 = vld [vmem:[%s4] sm:$0xf]
  %v309 = vld [vmem:[%s4 + $0x4] sm:$0xf]
  %v310 = vld [vmem:[%s4 + $0x8] sm:$0xf]
  %v311 = vld [vmem:[%s4 + $0xc] sm:$0xf]
  %v312 = vld [vmem:[%s5] sm:$0x1]
  %v314 = vlaneseq
  %v315 = vshrl.u32 %v314, 7
  %v316 = vsub.s32 0, %v315
  %v317 = vrot.slane %v312, %v316
  %v323 = vunpack.c.l.b16 %v308
  %v324 = vunpack.c.l.b16 %v309
  %v325 = vunpack.c.l.b16 %v310
  %v326 = vunpack.c.l.b16 %v311
  %v327 = vpack.c.b16 %v324, %v323
  %v328 = vpack.c.b16 %v326, %v325
  %vm331 = vcmask 261120
  %v333 = vsel %vm331, %v307, 0
  %335 = vmatprep.subr.bf16.mxu0 0
  %336 = vmatpush1.bf16.msra.mxu0 %v327
  %337 = vmatprep.subr.bf16.mxu0 0
  %338 = vmatpush1.bf16.msra.mxu0 %v328
  %339 = vmatprep.subr.bf16.mxu0 0
  %340 = vmatpush1.bf16.msra.mxu0 0
  %341 = vmatprep.subr.bf16.mxu0 0
  %342 = vmatpush1.bf16.msra.mxu0 0
  %343 = vmatprep.subr.bf16.mxu0 0
  %344 = vmatpush1.bf16.msra.mxu0 0
  %345 = vmatprep.subr.bf16.mxu0 0
  %346 = vmatpush1.bf16.msra.mxu0 0
  %347 = vmatprep.subr.bf16.mxu0 0
  %348 = vmatpush1.bf16.msra.mxu0 0
  %349 = vmatprep.subr.bf16.mxu0 0
  %350 = vmatpush1.bf16.msra.mxu0 0
  %351 = vmatprep.subr.bf16.mxu0 0
  %352 = vmatpush1.bf16.msra.mxu0 0
  %353 = vmatprep.subr.bf16.mxu0 0
  %354 = vmatpush1.bf16.msra.mxu0 0
  %355 = vmatprep.subr.bf16.mxu0 0
  %356 = vmatpush1.bf16.msra.mxu0 0
  %357 = vmatprep.subr.bf16.mxu0 0
  %358 = vmatpush1.bf16.msra.mxu0 0
  %359 = vmatprep.subr.bf16.mxu0 0
  %360 = vmatpush1.bf16.msra.mxu0 0
  %361 = vmatprep.subr.bf16.mxu0 0
  %362 = vmatpush1.bf16.msra.mxu0 0
  %363 = vmatprep.subr.bf16.mxu0 0
  %364 = vmatpush1.bf16.msra.mxu0 0
  %365 = vmatprep.subr.bf16.mxu0 0
  %366 = vmatpush1.bf16.msra.mxu0 0
  %367 = vmatprep.mubr.bf16.mxu0 0
  %368 = vmatmul.mubr.bf16.gmra.mrb[0].mxu0 %v333
  %v369 = vpop.f32.mrb[0].mxu0
  %v370 = vadd.f32 %v317, %v369
  %v371 = vpop.f32.mrb[0].mxu0
  %v372 = vpop.f32.mrb[0].mxu0
  %v373 = vpop.f32.mrb[0].mxu0
  %374 = vdwg.mxu0
  %v375 = vtanh.pop %v370
  %v376 = vmul.f32 %v25, %v375
  %v377 = vsel %vm93, %v376, 0.0
  %378 = vadd.xlane.f32.xlu0 %v377
  %v379 = vpop.xlane.xlu0 %378
  %v380 = vxor.u32 %v379, 2147483648
  %v381 = vmul.f32 %v380, 1.442695
  %v382 = vpow.pop %v381
  %v383 = vadd.f32 %v382, 1.0
  %v384 = vrcp.pop %v383
  %v385 = vmul.f32 1.0, %v384
  %vm386 = vcmask 3072
  %387 = vst.msk [vmem:[%s6] sm:$0xf] %vm386, %v385
  // Predicated region
  $region26: #{kgcn_forward.3} parent=0 // pred_check
    _
  $region27: #{kgcn_forward.3} parent=0 // pred_check_branch
    %389 = sbr.rel (0) target = $region29
  $region28: #{kgcn_forward.3} parent=0 // pred_region
    _
  $region29: #{kgcn_forward.3} parent=0 // pred_fallthru
    _
  // Predicated region
  $region30: #{kgcn_forward.3} parent=0 // pred_check
    _
  $region31: #{kgcn_forward.3} parent=0 // pred_check_branch
    %391 = sbr.rel (0) target = $region33
  $region32: #{kgcn_forward.3} parent=0 // pred_region
    _
  $region33: #{kgcn_forward.3} parent=0 // pred_fallthru
    _

// kernel: kgcn_forward.2
$region0: #{kgcn_forward.2}
  #allocation0 [shape = 'u32[]', space=smem, size = 0x4, offset = 0x4, fixed_abs, tag = 'smem constant byte address 0x4 - core index']
  #allocation1 [shape = 'u32[144,128]{1,0:T(1,128)}', space=vmem, size = 0x12000, scoped, tag = 'internal scratch']
  %s0 = inlined_call_operand.vmem [shape: bf16[4,1,32], index: 0, kind: input, shape index: {}]
  %s1 = inlined_call_operand.vmem [shape: bf16[4,5,32], index: 1, kind: input, shape index: {}]
  %s2 = inlined_call_operand.vmem [shape: bf16[4,5,4,32], index: 2, kind: input, shape index: {}]
  %s3 = inlined_call_operand.vmem [shape: bf16[4,5,4,32], index: 3, kind: input, shape index: {}]
  %s4 = inlined_call_operand.vmem [shape: bf16[32,32], index: 4, kind: input, shape index: {}]
  %s5 = inlined_call_operand.vmem [shape: f32[1,32], index: 5, kind: input, shape index: {}]
  %s6 = inlined_call_operand.vmem [shape: bf16[4,5,32], index: 6, kind: output, shape index: {}]
  %s7 = sld [smem:[#allocation0]]
  $region57: #{kgcn_forward.2} parent=0
    _
  %s9 = ssub.s32 1, %s7
  %s10 = scalar_select 0, %s9, %s7
  loop: start=0, step=1, limit=6
  $region2: #{kgcn_forward.2} parent=0 // loop_pre_header
    _
  $region3: #{kgcn_forward.2} parent=0 // loop_header
    %s12 = sphi 0, %s16
    %p13 = scmp.ge.s32.totalorder %s12, 6
    %s19 = sphi 0, %s31
    %s20 = sphi 0, %s27
    %s21 = sphi 0, %s19
    %s22 = sphi 0, %s20
    %s23 = sphi 0, %s21
    %s24 = sphi 0, %s22
    %s34 = sphi 0, %s36
    %s37 = sphi 0, %s34
    %s38 = sphi 0, %s37
    %s54 = sphi 0, %s38
    %s62 = sphi 0, %s64
    %s65 = sphi 0, %s62
    %s66 = sphi 0, %s65
    %s82 = sphi 0, %s66
    %s90 = sphi 0, %s92
    %s93 = sphi 0, %s90
    %s94 = sphi 0, %s93
    %s110 = sphi 0, %s94
    %s118 = sphi 0, %s120
    %s121 = sphi 0, %s118
    %s122 = sphi 0, %s121
    %s138 = sphi 0, %s122
    %s142 = sphi 0, %s142
    %s144 = sphi 0, %s142
    %s145 = sphi 0, %s144
    %s159 = sphi 0, %s145
    %s163 = sphi 0, %s163
    %s165 = sphi 0, %s163
    %s166 = sphi 0, %s165
    %s180 = sphi 0, %s166
    %s188 = sphi 0, %s190
    %s191 = sphi 0, %s188
    %s192 = sphi 0, %s191
    %s208 = sphi 0, %s192
  $region4: #{kgcn_forward.2} parent=0 // loop_header_branch
    %15 = sbr.rel (%p13) target = $region8
  $region5: #{kgcn_forward.2} parent=0 // loop_body
    %s17 = ssub.s32 %s12, 1
    %s18 = ssub.s32 %s12, 2
    %s25 = sadd.s32 1, %s20
    %p26 = scmp.ge.s32.totalorder %s25, 1
    %s27 = scalar_select %p26, 0, %s25
    %s28 = sadd.s32 1, %s19
    %s29 = scalar_select %p26, %s28, %s19
    %p30 = scmp.ge.s32.totalorder %s29, 4
    %s31 = scalar_select %p30, 0, %s29
    %s32 = ssub.s32 %s19, %s31
    %p33 = scmp.eq.s32.totalorder %s32, 0
    %s35 = sadd.s32 %s34, 1
    %s36 = scalar_select %p33, %s34, %s35
    %p39 = pneg %p33
    %p40 = scmp.eq.s32.totalorder %s12, 3
    %p41 = por %p39, %p40
    %p42 = scmp.ne.s32.totalorder %s34, %s37
    %p43 = scmp.eq.s32.totalorder %s12, 0
    %p44 = por %p42, %p43
    %p45 = scmp.ne.s32.totalorder %s34, %s37
    %p46 = scmp.eq.s32.totalorder %s17, 3
    %p47 = por %p45, %p46
    %p48 = scmp.ne.s32.totalorder %s37, %s38
    %p49 = scmp.eq.s32.totalorder %s17, 0
    %p50 = por %p48, %p49
    %p51 = scmp.ne.s32.totalorder %s37, %s38
    %p52 = scmp.eq.s32.totalorder %s18, 3
    %p53 = por %p51, %p52
    %p55 = scmp.ne.s32.totalorder %s38, %s54
    %p56 = scmp.eq.s32.totalorder %s18, 0
    %p57 = por %p55, %p56
    %s58 = ssub.s32 %s19, %s31
    %s59 = ssub.s32 %s20, %s27
    %s60 = sor.u32 %s58, %s59
    %p61 = scmp.eq.s32.totalorder %s60, 0
    %s63 = sadd.s32 %s62, 1
    %s64 = scalar_select %p61, %s62, %s63
    %p67 = pneg %p61
    %p68 = scmp.eq.s32.totalorder %s12, 3
    %p69 = por %p67, %p68
    %p70 = scmp.ne.s32.totalorder %s62, %s65
    %p71 = scmp.eq.s32.totalorder %s12, 0
    %p72 = por %p70, %p71
    %p73 = scmp.ne.s32.totalorder %s62, %s65
    %p74 = scmp.eq.s32.totalorder %s17, 3
    %p75 = por %p73, %p74
    %p76 = scmp.ne.s32.totalorder %s65, %s66
    %p77 = scmp.eq.s32.totalorder %s17, 0
    %p78 = por %p76, %p77
    %p79 = scmp.ne.s32.totalorder %s65, %s66
    %p80 = scmp.eq.s32.totalorder %s18, 3
    %p81 = por %p79, %p80
    %p83 = scmp.ne.s32.totalorder %s66, %s82
    %p84 = scmp.eq.s32.totalorder %s18, 0
    %p85 = por %p83, %p84
    %s86 = ssub.s32 %s19, %s31
    %s87 = ssub.s32 %s20, %s27
    %s88 = sor.u32 %s86, %s87
    %p89 = scmp.eq.s32.totalorder %s88, 0
    %s91 = sadd.s32 %s90, 1
    %s92 = scalar_select %p89, %s90, %s91
    %p95 = pneg %p89
    %p96 = scmp.eq.s32.totalorder %s12, 3
    %p97 = por %p95, %p96
    %p98 = scmp.ne.s32.totalorder %s90, %s93
    %p99 = scmp.eq.s32.totalorder %s12, 0
    %p100 = por %p98, %p99
    %p101 = scmp.ne.s32.totalorder %s90, %s93
    %p102 = scmp.eq.s32.totalorder %s17, 3
    %p103 = por %p101, %p102
    %p104 = scmp.ne.s32.totalorder %s93, %s94
    %p105 = scmp.eq.s32.totalorder %s17, 0
    %p106 = por %p104, %p105
    %p107 = scmp.ne.s32.totalorder %s93, %s94
    %p108 = scmp.eq.s32.totalorder %s18, 3
    %p109 = por %p107, %p108
    %p111 = scmp.ne.s32.totalorder %s94, %s110
    %p112 = scmp.eq.s32.totalorder %s18, 0
    %p113 = por %p111, %p112
    %s114 = ssub.s32 %s19, %s31
    %s115 = ssub.s32 %s20, %s27
    %s116 = sor.u32 %s114, %s115
    %p117 = scmp.eq.s32.totalorder %s116, 0
    %s119 = sadd.s32 %s118, 1
    %s120 = scalar_select %p117, %s118, %s119
    %p123 = pneg %p117
    %p124 = scmp.eq.s32.totalorder %s12, 3
    %p125 = por %p123, %p124
    %p126 = scmp.ne.s32.totalorder %s118, %s121
    %p127 = scmp.eq.s32.totalorder %s12, 0
    %p128 = por %p126, %p127
    %p129 = scmp.ne.s32.totalorder %s118, %s121
    %p130 = scmp.eq.s32.totalorder %s17, 3
    %p131 = por %p129, %p130
    %p132 = scmp.ne.s32.totalorder %s121, %s122
    %p133 = scmp.eq.s32.totalorder %s17, 0
    %p134 = por %p132, %p133
    %p135 = scmp.ne.s32.totalorder %s121, %s122
    %p136 = scmp.eq.s32.totalorder %s18, 3
    %p137 = por %p135, %p136
    %p139 = scmp.ne.s32.totalorder %s122, %s138
    %p140 = scmp.eq.s32.totalorder %s18, 0
    %p141 = por %p139, %p140
    %s143 = sadd.s32 %s142, 1
    %p146 = scmp.eq.s32.totalorder %s12, 3
    %p147 = scmp.ne.s32.totalorder %s142, %s144
    %p148 = scmp.eq.s32.totalorder %s12, 0
    %p149 = por %p147, %p148
    %p150 = scmp.ne.s32.totalorder %s142, %s144
    %p151 = scmp.eq.s32.totalorder %s17, 3
    %p152 = por %p150, %p151
    %p153 = scmp.ne.s32.totalorder %s144, %s145
    %p154 = scmp.eq.s32.totalorder %s17, 0
    %p155 = por %p153, %p154
    %p156 = scmp.ne.s32.totalorder %s144, %s145
    %p157 = scmp.eq.s32.totalorder %s18, 3
    %p158 = por %p156, %p157
    %p160 = scmp.ne.s32.totalorder %s145, %s159
    %p161 = scmp.eq.s32.totalorder %s18, 0
    %p162 = por %p160, %p161
    %s164 = sadd.s32 %s163, 1
    %p167 = scmp.eq.s32.totalorder %s12, 3
    %p168 = scmp.ne.s32.totalorder %s163, %s165
    %p169 = scmp.eq.s32.totalorder %s12, 0
    %p170 = por %p168, %p169
    %p171 = scmp.ne.s32.totalorder %s163, %s165
    %p172 = scmp.eq.s32.totalorder %s17, 3
    %p173 = por %p171, %p172
    %p174 = scmp.ne.s32.totalorder %s165, %s166
    %p175 = scmp.eq.s32.totalorder %s17, 0
    %p176 = por %p174, %p175
    %p177 = scmp.ne.s32.totalorder %s165, %s166
    %p178 = scmp.eq.s32.totalorder %s18, 3
    %p179 = por %p177, %p178
    %p181 = scmp.ne.s32.totalorder %s166, %s180
    %p182 = scmp.eq.s32.totalorder %s18, 0
    %p183 = por %p181, %p182
    %s184 = ssub.s32 %s19, %s31
    %s185 = ssub.s32 %s20, %s27
    %s186 = sor.u32 %s184, %s185
    %p187 = scmp.eq.s32.totalorder %s186, 0
    %s189 = sadd.s32 %s188, 1
    %s190 = scalar_select %p187, %s188, %s189
    %p193 = pneg %p187
    %p194 = scmp.eq.s32.totalorder %s12, 3
    %p195 = por %p193, %p194
    %p196 = scmp.ne.s32.totalorder %s188, %s191
    %p197 = scmp.eq.s32.totalorder %s12, 0
    %p198 = por %p196, %p197
    %p199 = scmp.ne.s32.totalorder %s188, %s191
    %p200 = scmp.eq.s32.totalorder %s17, 3
    %p201 = por %p199, %p200
    %p202 = scmp.ne.s32.totalorder %s191, %s192
    %p203 = scmp.eq.s32.totalorder %s17, 0
    %p204 = por %p202, %p203
    %p205 = scmp.ne.s32.totalorder %s191, %s192
    %p206 = scmp.eq.s32.totalorder %s18, 3
    %p207 = por %p205, %p206
    %p209 = scmp.ne.s32.totalorder %s192, %s208
    %p210 = scmp.eq.s32.totalorder %s18, 0
    %p211 = por %p209, %p210
    %p212 = scmp.le.s32.totalorder 1, %s12
    %p213 = scmp.lt.s32.totalorder %s12, 5
    %p214 = pnand %p212, %p213
    %p215 = pneg %p214
    // Predicated region
    $region9: #{kgcn_forward.2} parent=5 // pred_check
      _
    $region10: #{kgcn_forward.2} parent=5 // pred_check_branch
      %217 = sbr.rel (%p214) target = $region12
    $region11: #{kgcn_forward.2} parent=5 // pred_region
      %s218 = ssub.s32 %s12, 1
      // Predicated region
      $region13: #{kgcn_forward.2} parent=11 // pred_check
        %p219 = pneg %p155
      $region14: #{kgcn_forward.2} parent=11 // pred_check_branch
        %221 = sbr.rel (%p219) target = $region16
      $region15: #{kgcn_forward.2} parent=11 // pred_region
        _
      $region16: #{kgcn_forward.2} parent=11 // pred_fallthru
        _
      // Predicated region
      $region17: #{kgcn_forward.2} parent=11 // pred_check
        %p222 = pneg %p176
      $region18: #{kgcn_forward.2} parent=11 // pred_check_branch
        %224 = sbr.rel (%p222) target = $region20
      $region19: #{kgcn_forward.2} parent=11 // pred_region
        _
      $region20: #{kgcn_forward.2} parent=11 // pred_fallthru
        _
    $region12: #{kgcn_forward.2} parent=5 // pred_fallthru
      _
    %p225 = scmp.lt.s32.totalorder %s12, 4
    // Predicated region
    $region21: #{kgcn_forward.2} parent=5 // pred_check
      %p226 = pneg %p225
    $region22: #{kgcn_forward.2} parent=5 // pred_check_branch
      %228 = sbr.rel (%p226) target = $region24
    $region23: #{kgcn_forward.2} parent=5 // pred_region
      // Predicated region
      $region25: #{kgcn_forward.2} parent=23 // pred_check
        %p229 = pneg %p44
      $region26: #{kgcn_forward.2} parent=23 // pred_check_branch
        %231 = sbr.rel (%p229) target = $region28
      $region27: #{kgcn_forward.2} parent=23 // pred_region
        %p232 = scmp.lt.s32.totalorder %s19, 3
        %s233 = scalar_select %p232, %s19, 3
        %s234 = scalar_lea.vmem %s0, %s233
      $region28: #{kgcn_forward.2} parent=23 // pred_fallthru
        _
      // Predicated region
      $region29: #{kgcn_forward.2} parent=23 // pred_check
        %p235 = pneg %p72
      $region30: #{kgcn_forward.2} parent=23 // pred_check_branch
        %237 = sbr.rel (%p235) target = $region32
      $region31: #{kgcn_forward.2} parent=23 // pred_region
        %p238 = scmp.lt.s32.totalorder %s19, 3
        %s239 = scalar_select %p238, %s19, 3
        %p240 = scmp.lt.s32.totalorder %s20, 0
        %s241 = scalar_select %p240, %s20, 0
        %s242 = sadd.s32 %s241, %s239
        %s243 = smul.addr %s242, 4
        %s244 = scalar_lea.vmem %s1, %s243
      $region32: #{kgcn_forward.2} parent=23 // pred_fallthru
        _
      // Predicated region
      $region33: #{kgcn_forward.2} parent=23 // pred_check
        %p245 = pneg %p100
      $region34: #{kgcn_forward.2} parent=23 // pred_check_branch
        %247 = sbr.rel (%p245) target = $region36
      $region35: #{kgcn_forward.2} parent=23 // pred_region
        %s248 = smul.u32 5, %s20
        %p249 = scmp.lt.s32.totalorder %s19, 3
        %s250 = scalar_select %p249, %s19, 3
        %p251 = scmp.lt.s32.totalorder %s248, 4
        %s252 = scalar_select %p251, %s248, 4
        %s253 = smul.addr %s250, 5
        %s254 = sadd.s32 %s252, %s253
        %s255 = smul.addr %s254, 2
        %s256 = scalar_lea.vmem %s2, %s255
        %s257 = smul.u32 5, %s20
      $region36: #{kgcn_forward.2} parent=23 // pred_fallthru
        _
      // Predicated region
      $region37: #{kgcn_forward.2} parent=23 // pred_check
        %p258 = pneg %p128
      $region38: #{kgcn_forward.2} parent=23 // pred_check_branch
        %260 = sbr.rel (%p258) target = $region40
      $region39: #{kgcn_forward.2} parent=23 // pred_region
        %s261 = smul.u32 5, %s20
        %p262 = scmp.lt.s32.totalorder %s19, 3
        %s263 = scalar_select %p262, %s19, 3
        %p264 = scmp.lt.s32.totalorder %s261, 4
        %s265 = scalar_select %p264, %s261, 4
        %s266 = smul.addr %s263, 5
        %s267 = sadd.s32 %s265, %s266
        %s268 = smul.addr %s267, 2
        %s269 = scalar_lea.vmem %s3, %s268
        %s270 = smul.u32 5, %s20
      $region40: #{kgcn_forward.2} parent=23 // pred_fallthru
        _
    $region24: #{kgcn_forward.2} parent=5 // pred_fallthru
      _
    %p271 = scmp.le.s32.totalorder 1, %s12
    %p272 = scmp.lt.s32.totalorder %s12, 5
    %p273 = pnand %p271, %p272
    %p274 = pneg %p273
    // Predicated region
    $region41: #{kgcn_forward.2} parent=5 // pred_check
      _
    $region42: #{kgcn_forward.2} parent=5 // pred_check_branch
      %276 = sbr.rel (%p273) target = $region44
    $region43: #{kgcn_forward.2} parent=5 // pred_region
      %s277 = ssub.s32 %s12, 1
      %p278 = scmp.lt.s32.totalorder %s21, 3
      %s279 = scalar_select %p278, %s21, 3
      %s280 = scalar_lea.vmem %s0, %s279
      %p281 = pneg %p50
      %p282 = pneg %p47
      %p283 = scmp.lt.s32.totalorder %s21, 3
      %s284 = scalar_select %p283, %s21, 3
      %p285 = scmp.lt.s32.totalorder %s22, 0
      %s286 = scalar_select %p285, %s22, 0
      %s287 = sadd.s32 %s286, %s284
      %s288 = smul.addr %s287, 4
      %s289 = scalar_lea.vmem %s1, %s288
      %p290 = pneg %p78
      %p291 = pneg %p75
      %s292 = smul.u32 5, %s22
      %p293 = scmp.lt.s32.totalorder %s21, 3
      %s294 = scalar_select %p293, %s21, 3
      %p295 = scmp.lt.s32.totalorder %s292, 4
      %s296 = scalar_select %p295, %s292, 4
      %s297 = smul.addr %s294, 5
      %s298 = sadd.s32 %s296, %s297
      %s299 = smul.addr %s298, 2
      %s300 = scalar_lea.vmem %s2, %s299
      %p301 = pneg %p106
      %p302 = pneg %p103
      %s303 = smul.u32 5, %s22
      %p304 = scmp.lt.s32.totalorder %s21, 3
      %s305 = scalar_select %p304, %s21, 3
      %p306 = scmp.lt.s32.totalorder %s303, 4
      %s307 = scalar_select %p306, %s303, 4
      %s308 = smul.addr %s305, 5
      %s309 = sadd.s32 %s307, %s308
      %s310 = smul.addr %s309, 2
      %s311 = scalar_lea.vmem %s3, %s310
      %p312 = pneg %p134
      %p313 = pneg %p131
      %p314 = pneg %p155
      %p315 = pneg %p152
      %p316 = pneg %p176
      %p317 = pneg %p173
      %p318 = pneg %p204
      %p319 = pneg %p201
      %p320 = scmp.lt.s32.totalorder %s21, 3
      %s321 = scalar_select %p320, %s21, 3
      %p322 = scmp.lt.s32.totalorder %s22, 0
      %s323 = scalar_select %p322, %s22, 0
      %s324 = sadd.s32 %s323, %s321
      %s325 = smul.addr %s324, 4
      %s326 = scalar_lea.vmem %s6, %s325
      %p327 = scmp.lt.s32.totalorder %s21, 3
      %s328 = scalar_select %p327, %s21, 3
      %s329 = scalar_lea.vmem %s0, %s328
      %p330 = scmp.lt.s32.totalorder %s21, 3
      %s331 = scalar_select %p330, %s21, 3
      %p332 = scmp.lt.s32.totalorder %s22, 0
      %s333 = scalar_select %p332, %s22, 0
      %s334 = sadd.s32 %s333, %s331
      %s335 = smul.addr %s334, 4
      %s336 = scalar_lea.vmem %s1, %s335
      %s337 = smul.u32 5, %s22
      %p338 = scmp.lt.s32.totalorder %s21, 3
      %s339 = scalar_select %p338, %s21, 3
      %p340 = scmp.lt.s32.totalorder %s337, 4
      %s341 = scalar_select %p340, %s337, 4
      %s342 = smul.addr %s339, 5
      %s343 = sadd.s32 %s341, %s342
      %s344 = smul.addr %s343, 2
      %s345 = scalar_lea.vmem %s2, %s344
      %s346 = smul.u32 5, %s22
      %s347 = smul.u32 5, %s22
      %p348 = scmp.lt.s32.totalorder %s21, 3
      %s349 = scalar_select %p348, %s21, 3
      %p350 = scmp.lt.s32.totalorder %s347, 4
      %s351 = scalar_select %p350, %s347, 4
      %s352 = smul.addr %s349, 5
      %s353 = sadd.s32 %s351, %s352
      %s354 = smul.addr %s353, 2
      %s355 = scalar_lea.vmem %s3, %s354
      %s356 = smul.u32 5, %s22
      %p357 = scmp.lt.s32.totalorder %s21, 3
      %s358 = scalar_select %p357, %s21, 3
      %p359 = scmp.lt.s32.totalorder %s22, 0
      %s360 = scalar_select %p359, %s22, 0
      %s361 = sadd.s32 %s360, %s358
      %s362 = smul.addr %s361, 4
      %s363 = scalar_lea.vmem %s6, %s362
      %v365 = vld [vmem:[%s329] sm:$0x1]
      %v366 = vunpack.c.l.bf16 %v365
      %v367 = vld [vmem:[%s336] sm:$0x7]
      %v368 = vunpack.c.l.bf16 %v367
      %v369 = vld [vmem:[%s345] sm:$0x3]
      %v370 = vld [vmem:[%s345 + $0x2] sm:$0x3]
      %v371 = vld [vmem:[%s345 + $0x4] sm:$0x3]
      %v372 = vld [vmem:[%s345 + $0x6] sm:$0x3]
      %v373 = vld [vmem:[%s345 + $0x8] sm:$0x3]
      %v374 = vunpack.c.l.bf16 %v369
      %v375 = vunpack.c.l.bf16 %v370
      %v376 = vunpack.c.l.bf16 %v371
      %v377 = vunpack.c.l.bf16 %v372
      %v378 = vunpack.c.l.bf16 %v373
      %v379 = vld [vmem:[%s355] sm:$0x3]
      %v380 = vld [vmem:[%s355 + $0x2] sm:$0x3]
      %v381 = vld [vmem:[%s355 + $0x4] sm:$0x3]
      %v382 = vld [vmem:[%s355 + $0x6] sm:$0x3]
      %v383 = vld [vmem:[%s355 + $0x8] sm:$0x3]
      %v384 = vunpack.c.l.bf16 %v379
      %v385 = vunpack.c.l.bf16 %v380
      %v386 = vunpack.c.l.bf16 %v381
      %v387 = vunpack.c.l.bf16 %v382
      %v388 = vunpack.c.l.bf16 %v383
      %v389 = vlaneseq
      %v390 = vshrl.u32 %v389, 7
      %v391 = vsub.s32 0, %v390
      %v392 = vrot.slane %v366, %v391
      %v393 = vmul.f32 %v392, %v384
      %v394 = vmul.f32 %v392, %v385
      %v395 = vmul.f32 %v392, %v386
      %v396 = vmul.f32 %v392, %v387
      %v397 = vmul.f32 %v392, %v388
      %vm398 = vcmask 257024
      %v399 = vsel %vm398, %v393, 0.0
      %400 = vadd.xlane.f32.xlu0 %v399
      %v401 = vpop.xlane.xlu0 %400
      %v402 = vsel %vm398, %v394, 0.0
      %403 = vadd.xlane.f32.xlu0 %v402
      %v404 = vpop.xlane.xlu0 %403
      %v405 = vsel %vm398, %v395, 0.0
      %406 = vadd.xlane.f32.xlu0 %v405
      %v407 = vpop.xlane.xlu0 %406
      %v408 = vsel %vm398, %v396, 0.0
      %409 = vadd.xlane.f32.xlu0 %v408
      %v410 = vpop.xlane.xlu0 %409
      %v411 = vsel %vm398, %v397, 0.0
      %412 = vadd.xlane.f32.xlu0 %v411
      %v413 = vpop.xlane.xlu0 %412
      %v419 = vlaneseq
      %v420 = vand.u32 %v419, 127
      %v421 = vlaneseq
      %v422 = vshrl.u32 %v421, 7
      %v423 = vsub.s32 %v420, %v422
      %v424 = vrot.slane %v401, %v423
      %v425 = vlaneseq
      %v426 = vshrl.u32 %v425, 7
      %v427 = vsub.s32 %v420, %v426
      %v428 = vrot.slane %v404, %v427
      %v429 = vlaneseq
      %v430 = vshrl.u32 %v429, 7
      %v431 = vsub.s32 %v420, %v430
      %v432 = vrot.slane %v407, %v431
      %v433 = vlaneseq
      %v434 = vshrl.u32 %v433, 7
      %v435 = vsub.s32 %v420, %v434
      %v436 = vrot.slane %v410, %v435
      %v437 = vlaneseq
      %v438 = vshrl.u32 %v437, 7
      %v439 = vsub.s32 %v420, %v438
      %v440 = vrot.slane %v413, %v439
      %vm441 = vcmask 1041409
      %v442 = vsel %vm441, %v428, %v424
      %vm443 = vcmask 1042434
      %v444 = vsel %vm443, %v432, %v442
      %vm445 = vcmask 1043459
      %v446 = vsel %vm445, %v436, %v444
      %vm447 = vcmask 1044484
      %v448 = vsel %vm447, %v440, %v446
      %vm450 = vcmask 28672
      %v451 = vsel %vm450, %v448, -inf
      %452 = vmax.xlane.f32.xlu0 %v451
      %v453 = vpop.xlane.xlu0 %452
      %v455 = vlaneseq
      %v456 = vshrl.u32 %v455, 7
      %v457 = vsub.s32 0, %v456
      %v458 = vrot.slane %v453, %v457
      %v459 = vlaneseq
      %v460 = vshrl.u32 %v459, 7
      %v461 = vsub.s32 1, %v460
      %v462 = vrot.slane %v453, %v461
      %v463 = vlaneseq
      %v464 = vshrl.u32 %v463, 7
      %v465 = vsub.s32 2, %v464
      %v466 = vrot.slane %v453, %v465
      %v467 = vlaneseq
      %v468 = vshrl.u32 %v467, 7
      %v469 = vsub.s32 3, %v468
      %v470 = vrot.slane %v453, %v469
      %v471 = vlaneseq
      %v472 = vshrl.u32 %v471, 7
      %v473 = vsub.s32 4, %v472
      %v474 = vrot.slane %v453, %v473
      %v480 = vsub.f32 %v401, %v458
      %v481 = vsub.f32 %v404, %v462
      %v482 = vsub.f32 %v407, %v466
      %v483 = vsub.f32 %v410, %v470
      %v484 = vsub.f32 %v413, %v474
      %v485 = vmul.f32 %v480, 1.442695
      %v486 = vpow.pop %v485
      %v487 = vmul.f32 %v481, 1.442695
      %v488 = vpow.pop %v487
      %v489 = vmul.f32 %v482, 1.442695
      %v490 = vpow.pop %v489
      %v491 = vmul.f32 %v483, 1.442695
      %v492 = vpow.pop %v491
      %v493 = vmul.f32 %v484, 1.442695
      %v494 = vpow.pop %v493
      %500 = vset.pattern.permute.xlu0 0
      %501 = vperm.xlu0 %500, %v486
      %v502 = vpop.permute.xlu0 %501
      %503 = vset.pattern.permute.xlu0 0
      %504 = vperm.xlu0 %503, %v488
      %v505 = vpop.permute.xlu0 %504
      %506 = vset.pattern.permute.xlu0 0
      %507 = vperm.xlu0 %506, %v490
      %v508 = vpop.permute.xlu0 %507
      %509 = vset.pattern.permute.xlu0 0
      %510 = vperm.xlu0 %509, %v492
      %v511 = vpop.permute.xlu0 %510
      %512 = vset.pattern.permute.xlu0 0
      %513 = vperm.xlu0 %512, %v494
      %v514 = vpop.permute.xlu0 %513
      %v515 = vlaneseq
      %v516 = vshrl.u32 %v515, 7
      %v517 = vsub.s32 %v420, %v516
      %v518 = vrot.slane %v502, %v517
      %v519 = vlaneseq
      %v520 = vshrl.u32 %v519, 7
      %v521 = vsub.s32 %v420, %v520
      %v522 = vrot.slane %v505, %v521
      %v523 = vlaneseq
      %v524 = vshrl.u32 %v523, 7
      %v525 = vsub.s32 %v420, %v524
      %v526 = vrot.slane %v508, %v525
      %v527 = vlaneseq
      %v528 = vshrl.u32 %v527, 7
      %v529 = vsub.s32 %v420, %v528
      %v530 = vrot.slane %v511, %v529
      %v531 = vlaneseq
      %v532 = vshrl.u32 %v531, 7
      %v533 = vsub.s32 %v420, %v532
      %v534 = vrot.slane %v514, %v533
      %v535 = vsel %vm441, %v522, %v518
      %v536 = vsel %vm443, %v526, %v535
      %v537 = vsel %vm445, %v530, %v536
      %v538 = vsel %vm447, %v534, %v537
      %v540 = vsel %vm450, %v538, 0.0
      %541 = vadd.xlane.f32.xlu0 %v540
      %v542 = vpop.xlane.xlu0 %541
      %v543 = vrcp.pop %v542
      %v545 = vlaneseq
      %v546 = vshrl.u32 %v545, 7
      %v547 = vsub.s32 0, %v546
      %v548 = vrot.slane %v543, %v547
      %v549 = vlaneseq
      %v550 = vshrl.u32 %v549, 7
      %v551 = vsub.s32 1, %v550
      %v552 = vrot.slane %v543, %v551
      %v553 = vlaneseq
      %v554 = vshrl.u32 %v553, 7
      %v555 = vsub.s32 2, %v554
      %v556 = vrot.slane %v543, %v555
      %v557 = vlaneseq
      %v558 = vshrl.u32 %v557, 7
      %v559 = vsub.s32 3, %v558
      %v560 = vrot.slane %v543, %v559
      %v561 = vlaneseq
      %v562 = vshrl.u32 %v561, 7
      %v563 = vsub.s32 4, %v562
      %v564 = vrot.slane %v543, %v563
      %v570 = vmul.f32 %v486, %v548
      %v571 = vmul.f32 %v488, %v552
      %v572 = vmul.f32 %v490, %v556
      %v573 = vmul.f32 %v492, %v560
      %v574 = vmul.f32 %v494, %v564
      %576 = vset.pattern.permute.xlu0 0
      %577 = vperm.xlu0 %576, %v570
      %v578 = vpop.permute.xlu0 %577
      %581 = vset.pattern.permute.xlu0 0
      %582 = vperm.xlu0 %581, %v571
      %v583 = vpop.permute.xlu0 %582
      %586 = vset.pattern.permute.xlu0 0
      %587 = vperm.xlu0 %586, %v572
      %v588 = vpop.permute.xlu0 %587
      %591 = vset.pattern.permute.xlu0 0
      %592 = vperm.xlu0 %591, %v573
      %v593 = vpop.permute.xlu0 %592
      %596 = vset.pattern.permute.xlu0 0
      %597 = vperm.xlu0 %596, %v574
      %v598 = vpop.permute.xlu0 %597
      %v600 = vmul.f32 %v578, %v374
      %v601 = vmul.f32 %v583, %v375
      %v602 = vmul.f32 %v588, %v376
      %v603 = vmul.f32 %v593, %v377
      %v604 = vmul.f32 %v598, %v378
      %v605 = vsel %vm398, %v600, 0.0
      %v606 = vrot.slane %v605, 4
      %v607 = vadd.f32 %v605, %v606
      %v608 = vrot.slane %v607, 2
      %v609 = vadd.f32 %v607, %v608
      %v610 = vrot.slane %v609, 1
      %v611 = vadd.f32 %v609, %v610
      %v612 = vsel %vm398, %v601, 0.0
      %v613 = vrot.slane %v612, 4
      %v614 = vadd.f32 %v612, %v613
      %v615 = vrot.slane %v614, 2
      %v616 = vadd.f32 %v614, %v615
      %v617 = vrot.slane %v616, 1
      %v618 = vadd.f32 %v616, %v617
      %v619 = vsel %vm398, %v602, 0.0
      %v620 = vrot.slane %v619, 4
      %v621 = vadd.f32 %v619, %v620
      %v622 = vrot.slane %v621, 2
      %v623 = vadd.f32 %v621, %v622
      %v624 = vrot.slane %v623, 1
      %v625 = vadd.f32 %v623, %v624
      %v626 = vsel %vm398, %v603, 0.0
      %v627 = vrot.slane %v626, 4
      %v628 = vadd.f32 %v626, %v627
      %v629 = vrot.slane %v628, 2
      %v630 = vadd.f32 %v628, %v629
      %v631 = vrot.slane %v630, 1
      %v632 = vadd.f32 %v630, %v631
      %v633 = vsel %vm398, %v604, 0.0
      %v634 = vrot.slane %v633, 4
      %v635 = vadd.f32 %v633, %v634
      %v636 = vrot.slane %v635, 2
      %v637 = vadd.f32 %v635, %v636
      %v638 = vrot.slane %v637, 1
      %v639 = vadd.f32 %v637, %v638
      %v645 = vsel %vm441, %v618, %v611
      %v646 = vsel %vm443, %v625, %v645
      %v647 = vsel %vm445, %v632, %v646
      %v648 = vsel %vm447, %v639, %v647
      %v650 = vadd.f32 %v368, %v648
      %v651 = vpack.c.bf16 %v650, %v650
      %v652 = vld [vmem:[%s4] sm:$0xf]
      %v653 = vld [vmem:[%s4 + $0x4] sm:$0xf]
      %v654 = vld [vmem:[%s4 + $0x8] sm:$0xf]
      %v655 = vld [vmem:[%s4 + $0xc] sm:$0xf]
      %v656 = vld [vmem:[%s5] sm:$0x1]
      %v658 = vlaneseq
      %v659 = vshrl.u32 %v658, 7
      %v660 = vsub.s32 0, %v659
      %v661 = vrot.slane %v656, %v660
      %v667 = vunpack.c.l.b16 %v652
      %v668 = vunpack.c.l.b16 %v653
      %v669 = vunpack.c.l.b16 %v654
      %v670 = vunpack.c.l.b16 %v655
      %v671 = vpack.c.b16 %v668, %v667
      %v672 = vpack.c.b16 %v670, %v669
      %vm675 = vcmask 261120
      %v677 = vsel %vm675, %v651, 0
      %679 = vmatprep.subr.bf16.mxu0 0
      %680 = vmatpush1.bf16.msra.mxu0 %v671
      %681 = vmatprep.subr.bf16.mxu0 0
      %682 = vmatpush1.bf16.msra.mxu0 %v672
      %683 = vmatprep.subr.bf16.mxu0 0
      %684 = vmatpush1.bf16.msra.mxu0 0
      %685 = vmatprep.subr.bf16.mxu0 0
      %686 = vmatpush1.bf16.msra.mxu0 0
      %687 = vmatprep.subr.bf16.mxu0 0
      %688 = vmatpush1.bf16.msra.mxu0 0
      %689 = vmatprep.subr.bf16.mxu0 0
      %690 = vmatpush1.bf16.msra.mxu0 0
      %691 = vmatprep.subr.bf16.mxu0 0
      %692 = vmatpush1.bf16.msra.mxu0 0
      %693 = vmatprep.subr.bf16.mxu0 0
      %694 = vmatpush1.bf16.msra.mxu0 0
      %695 = vmatprep.subr.bf16.mxu0 0
      %696 = vmatpush1.bf16.msra.mxu0 0
      %697 = vmatprep.subr.bf16.mxu0 0
      %698 = vmatpush1.bf16.msra.mxu0 0
      %699 = vmatprep.subr.bf16.mxu0 0
      %700 = vmatpush1.bf16.msra.mxu0 0
      %701 = vmatprep.subr.bf16.mxu0 0
      %702 = vmatpush1.bf16.msra.mxu0 0
      %703 = vmatprep.subr.bf16.mxu0 0
      %704 = vmatpush1.bf16.msra.mxu0 0
      %705 = vmatprep.subr.bf16.mxu0 0
      %706 = vmatpush1.bf16.msra.mxu0 0
      %707 = vmatprep.subr.bf16.mxu0 0
      %708 = vmatpush1.bf16.msra.mxu0 0
      %709 = vmatprep.subr.bf16.mxu0 0
      %710 = vmatpush1.bf16.msra.mxu0 0
      %711 = vmatprep.mubr.bf16.mxu0 0
      %712 = vmatmul.mubr.bf16.gmra.mrb[0].mxu0 %v677
      %v713 = vpop.f32.mrb[0].mxu0
      %v714 = vadd.f32 %v661, %v713
      %v715 = vpop.f32.mrb[0].mxu0
      %v716 = vpop.f32.mrb[0].mxu0
      %v717 = vpop.f32.mrb[0].mxu0
      %718 = vdwg.mxu0
      %v719 = vxor.u32 %v714, 2147483648
      %v720 = vmul.f32 %v719, 1.442695
      %v721 = vpow.pop %v720
      %v722 = vadd.f32 %v721, 1.0
      %v723 = vrcp.pop %v722
      %v724 = vmul.f32 1.0, %v723
      %v725 = vpack.c.bf16 %v724, %v724
      %vm726 = vcmask 256000
      %vm727 = vsmask.f32 2304
      %vm728 = vmand %vm726, %vm727
      %v729 = vld [vmem:[%s363] sm:$0x7]
      %v730 = vsel %vm728, %v725, %v729
      %731 = vst [vmem:[%s363] sm:$0x7] %v730
      %p732 = scmp.lt.s32.totalorder %s21, 3
      %s733 = scalar_select %p732, %s21, 3
      %p734 = scmp.lt.s32.totalorder %s22, 0
      %s735 = scalar_select %p734, %s22, 0
      %s736 = sadd.s32 %s735, %s733
      %s737 = smul.addr %s736, 4
      %s738 = scalar_lea.vmem %s6, %s737
      // Predicated region
      $region45: #{kgcn_forward.2} parent=43 // pred_check
        %p739 = pneg %p201
      $region46: #{kgcn_forward.2} parent=43 // pred_check_branch
        %741 = sbr.rel (%p739) target = $region48
      $region47: #{kgcn_forward.2} parent=43 // pred_region
        _
      $region48: #{kgcn_forward.2} parent=43 // pred_fallthru
        _
    $region44: #{kgcn_forward.2} parent=5 // pred_fallthru
      _
    %p742 = scmp.le.s32.totalorder 2, %s12
    // Predicated region
    $region49: #{kgcn_forward.2} parent=5 // pred_check
      %p743 = pneg %p742
    $region50: #{kgcn_forward.2} parent=5 // pred_check_branch
      %745 = sbr.rel (%p743) target = $region52
    $region51: #{kgcn_forward.2} parent=5 // pred_region
      %s746 = ssub.s32 %s12, 2
      // Predicated region
      $region53: #{kgcn_forward.2} parent=51 // pred_check
        %p747 = pneg %p207
      $region54: #{kgcn_forward.2} parent=51 // pred_check_branch
        %749 = sbr.rel (%p747) target = $region56
      $region55: #{kgcn_forward.2} parent=51 // pred_region
        %p750 = scmp.lt.s32.totalorder %s23, 3
        %s751 = scalar_select %p750, %s23, 3
        %p752 = scmp.lt.s32.totalorder %s24, 0
        %s753 = scalar_select %p752, %s24, 0
        %s754 = sadd.s32 %s753, %s751
        %s755 = smul.addr %s754, 4
        %s756 = scalar_lea.vmem %s6, %s755
      $region56: #{kgcn_forward.2} parent=51 // pred_fallthru
        _
    $region52: #{kgcn_forward.2} parent=5 // pred_fallthru
      _
  $region6: #{kgcn_forward.2} parent=0 // loop_footer
    %s16 = sadd.s32 1, %s12
  $region7: #{kgcn_forward.2} parent=0 // loop_footer_branch
    %11 = sbr.rel target = $region3
  $region8: #{kgcn_forward.2} parent=0 // loop_exit
    _

</llo_original>
